<compile_context>
chip_gen: v6e
topology: v6e:2x2x1
jax: 0.10.0
libtpu: 0.0.40
codegen_flags: <defaults>
</compile_context>

<pallas_src>
import functools

import jax
import jax.numpy as jnp
from jax import lax
from jax.experimental import pallas as pl
from jax.experimental.pallas import tpu as pltpu


def _round_up(n: int, m: int) -> int:
    return ((n + m - 1) // m) * m


def _policy_kernel(x_ref,
                   w1_ref, b1_ref,
                   w2_ref, b2_ref,
                   wh_ref, bh_ref,
                   out_ref, *, act_dims: int):
    # x: (obs_dims, TB)  -- batch on lanes (lane-dense compute throughout).
    x = x_ref[...]

    # shared_net: Linear -> Tanh -> Linear -> Tanh  (computed transposed)
    h1 = jnp.tanh(
        jnp.dot(w1_ref[...], x, preferred_element_type=jnp.float32) + b1_ref[...]
    )                                                    # (16, TB)
    h2 = jnp.tanh(
        jnp.dot(w2_ref[...], h1, preferred_element_type=jnp.float32) + b2_ref[...]
    )                                                    # (32, TB)

    # Fused heads: rows [0, act) = mean head, rows [act, 2*act) = stddev head.
    # One MXU matmul instead of two.
    z = jnp.dot(wh_ref[...], h2, preferred_element_type=jnp.float32) + bh_ref[...]

    # Numerically stable softplus: max(z, 0) + log(1 + exp(-|z|)).
    # exp argument is always <= 0, so no overflow (EUP ops).
    sp = jnp.maximum(z, 0.0) + jnp.log(1.0 + jnp.exp(-jnp.abs(z)))

    # Mean rows stay raw, stddev rows get softplus; one lane-dense slab write.
    rows = lax.broadcasted_iota(jnp.int32, z.shape, 0)
    out_ref[...] = jnp.where(rows < act_dims, z, sp)


def fuse_params(p):
    """One-time prep (hoisted out of the per-call path): transpose the linear
    layers into (out, in) form and fuse the mean/std heads into one matmul."""
    return dict(
        w1T=jnp.asarray(p["w1"]).T,                              # (16, obs)
        b1=jnp.asarray(p["b1"]).reshape(-1, 1),                  # (16, 1)
        w2T=jnp.asarray(p["w2"]).T,                              # (32, 16)
        b2=jnp.asarray(p["b2"]).reshape(-1, 1),                  # (32, 1)
        whT=jnp.concatenate([p["wm"], p["ws"]], axis=1).T,       # (2*act, 32)
        bhT=jnp.concatenate([p["bm"], p["bs"]], axis=1).reshape(-1, 1),
    )


@jax.jit
def drone_policy_forward(x, fp):
    """x: (B, obs_dims). fp: output of fuse_params. Returns (means, stddevs)."""
    B, obs_dims = x.shape
    two_act = fp["whT"].shape[0]
    act_dims = two_act // 2

    # Batch on lanes: transpose once in the wrapper (under the same jit).
    xT = x.astype(jnp.float32).T                                 # (obs, B)

    # Tile selection on the lane (batch) axis:
    #   B <= 4096  -> one block covering B (block dim == full dim is legal).
    #   B >  4096  -> 128-aligned tile ~B/2 capped at 8192 so there are
    #                 always >= 2 parallel tiles (v7x dual TC) and the grid
    #                 overhead stays negligible.  No pre-padding: pl.cdiv grid
    #                 with a ragged (clipped) last block.
    if B <= 4096:
        TB = B
    else:
        TB = min(8192, _round_up(-(-B // 2), 128))
    grid = (pl.cdiv(B, TB),)

    def full_block(a):
        # Weights / biases: whole array every grid step (stay VMEM-resident).
        return pl.BlockSpec(a.shape, lambda i: (0, 0))

    out = pl.pallas_call(
        functools.partial(_policy_kernel, act_dims=act_dims),
        out_shape=jax.ShapeDtypeStruct((two_act, B), jnp.float32),
        grid=grid,
        in_specs=[
            pl.BlockSpec((obs_dims, TB), lambda i: (0, i)),
            full_block(fp["w1T"]), full_block(fp["b1"]),
            full_block(fp["w2T"]), full_block(fp["b2"]),
            full_block(fp["whT"]), full_block(fp["bhT"]),
        ],
        out_specs=pl.BlockSpec((two_act, TB), lambda i: (0, i)),
        compiler_params=pltpu.CompilerParams(
            dimension_semantics=("parallel",)),
    )(xT, fp["w1T"], fp["b1"], fp["w2T"], fp["b2"], fp["whT"], fp["bhT"])

    # Slices + transposes stay under the same jit so XLA fuses them.
    action_means = out[:act_dims, :].T
    action_stddevs = out[act_dims:, :].T
    return action_means, action_stddevs


def init_params(key, obs_dims, act_dims, h1=16, h2=32):
    """Deterministic init mimicking nn.Linear default (U[-1/sqrt(fan_in), +])."""
    def linear(key, fan_in, fan_out):
        kw, kb = jax.random.split(key)
        bound = 1.0 / jnp.sqrt(fan_in)
        w = jax.random.uniform(kw, (fan_in, fan_out), jnp.float32, -bound, bound)
        b = jax.random.uniform(kb, (1, fan_out), jnp.float32, -bound, bound)
        return w, b

    k1, k2, k3, k4 = jax.random.split(key, 4)
    w1, b1 = linear(k1, obs_dims, h1)
    w2, b2 = linear(k2, h1, h2)
    wm, bm = linear(k3, h2, act_dims)
    ws, bs = linear(k4, h2, act_dims)
    return dict(w1=w1, b1=b1, w2=w2, b2=b2, wm=wm, bm=bm, ws=ws, bs=bs)


def reference_forward(x, p):
    """Pure-JAX reference for correctness checking (matches the torch module)."""
    h1 = jnp.tanh(x @ p["w1"] + p["b1"])
    h2 = jnp.tanh(h1 @ p["w2"] + p["b2"])
    mean = h2 @ p["wm"] + p["bm"]
    std = jnp.log(1.0 + jnp.exp(h2 @ p["ws"] + p["bs"]))
    return mean, std


if __name__ == "__main__":
    key = jax.random.PRNGKey(0)
    k_obs, k_params = jax.random.split(key)

    batch = 8          # small batch (drone observations)
    obs_dims = 12      # e.g. position/velocity/orientation-like state
    act_dims = 4       # e.g. rotor commands

    x = jax.random.normal(k_obs, (batch, obs_dims), dtype=jnp.float32)
    params = init_params(k_params, obs_dims, act_dims)
    fused = fuse_params(params)
    jax.block_until_ready(fused)

    means, stddevs = drone_policy_forward(x, fused)
    jax.block_until_ready((means, stddevs))

    # sanity check against pure-JAX reference
    ref_means, ref_stddevs = reference_forward(x, params)
    assert means.shape == (batch, act_dims)
    assert stddevs.shape == (batch, act_dims)
    assert jnp.allclose(means, ref_means, atol=1e-5, rtol=1e-5)
    assert jnp.allclose(stddevs, ref_stddevs, atol=1e-5, rtol=1e-5)
    assert bool(jnp.all(stddevs > 0.0))

    # single-tile path, B not a multiple of 8 / 128
    xb = jax.random.normal(k_obs, (1000, obs_dims), dtype=jnp.float32)
    mb, sb = drone_policy_forward(xb, fused)
    jax.block_until_ready((mb, sb))
    rmb, rsb = reference_forward(xb, params)
    assert jnp.allclose(mb, rmb, atol=1e-5, rtol=1e-5)
    assert jnp.allclose(sb, rsb, atol=1e-5, rtol=1e-5)

    # multi-tile path with a ragged last block (B > 4096, not a tile multiple)
    xc = jax.random.normal(k_obs, (5000, obs_dims), dtype=jnp.float32)
    mc, sc = drone_policy_forward(xc, fused)
    jax.block_until_ready((mc, sc))
    rmc, rsc = reference_forward(xc, params)
    assert jnp.allclose(mc, rmc, atol=1e-5, rtol=1e-5)
    assert jnp.allclose(sc, rsc, atol=1e-5, rtol=1e-5)

    print("KERNEL_OK")
</pallas_src>

<mosaic_0001>
module attributes {stable_mosaic.version = 11 : i64} {
  func.func @_policy_kernel(%arg0: i32, %arg1: memref<12x8xf32, #tpu.memory_space<vmem>>, %arg2: memref<16x12xf32, #tpu.memory_space<vmem>>, %arg3: memref<16x1xf32, #tpu.memory_space<vmem>>, %arg4: memref<32x16xf32, #tpu.memory_space<vmem>>, %arg5: memref<32x1xf32, #tpu.memory_space<vmem>>, %arg6: memref<8x32xf32, #tpu.memory_space<vmem>>, %arg7: memref<8x1xf32, #tpu.memory_space<vmem>>, %arg8: memref<8x8xf32, #tpu.memory_space<vmem>>) attributes {dimension_semantics = [#tpu.dimension_semantics<parallel>], iteration_bounds = array<i64: 1>, scalar_prefetch = 0 : i64, scratch_operands = 0 : i64, tpu.core_type = #tpu.core_type<tc>, window_params = [{transform_indices = @transform_0, window_bounds = array<i64: 12, 8>}, {pipeline_mode = #tpu.pipeline_mode<synchronous>, transform_indices = @transform_1, window_bounds = array<i64: 16, 12>}, {pipeline_mode = #tpu.pipeline_mode<synchronous>, transform_indices = @transform_2, window_bounds = array<i64: 16, 1>}, {pipeline_mode = #tpu.pipeline_mode<synchronous>, transform_indices = @transform_3, window_bounds = array<i64: 32, 16>}, {pipeline_mode = #tpu.pipeline_mode<synchronous>, transform_indices = @transform_4, window_bounds = array<i64: 32, 1>}, {pipeline_mode = #tpu.pipeline_mode<synchronous>, transform_indices = @transform_5, window_bounds = array<i64: 8, 32>}, {pipeline_mode = #tpu.pipeline_mode<synchronous>, transform_indices = @transform_6, window_bounds = array<i64: 8, 1>}, {transform_indices = @transform_7, window_bounds = array<i64: 8, 8>}]} {
    %c0 = arith.constant 0 : index
    %c0_0 = arith.constant 0 : index
    %0 = vector.load %arg1[%c0, %c0_0] : memref<12x8xf32, #tpu.memory_space<vmem>>, vector<12x8xf32>
    %c0_1 = arith.constant 0 : index
    %c0_2 = arith.constant 0 : index
    %1 = vector.load %arg2[%c0_1, %c0_2] : memref<16x12xf32, #tpu.memory_space<vmem>>, vector<16x12xf32>
    %cst = arith.constant dense<0.000000e+00> : vector<16x8xf32>
    %2 = tpu.matmul %1, %0, %cst {dimension_numbers = #tpu.dot_dimension_numbers<[1], [0], [0], [1], [0, 0, 1, 1], [], []>} : vector<16x12xf32>, vector<12x8xf32>, vector<16x8xf32> -> vector<16x8xf32>
    %c0_3 = arith.constant 0 : index
    %c0_4 = arith.constant 0 : index
    %3 = vector.load %arg3[%c0_3, %c0_4] : memref<16x1xf32, #tpu.memory_space<vmem>>, vector<16x1xf32>
    %4 = vector.broadcast %3 : vector<16x1xf32> to vector<16x8xf32>
    %5 = arith.addf %2, %4 : vector<16x8xf32>
    %6 = math.tanh %5 : vector<16x8xf32>
    %c0_5 = arith.constant 0 : index
    %c0_6 = arith.constant 0 : index
    %7 = vector.load %arg4[%c0_5, %c0_6] : memref<32x16xf32, #tpu.memory_space<vmem>>, vector<32x16xf32>
    %cst_7 = arith.constant dense<0.000000e+00> : vector<32x8xf32>
    %8 = tpu.matmul %7, %6, %cst_7 {dimension_numbers = #tpu.dot_dimension_numbers<[1], [0], [0], [1], [0, 0, 1, 1], [], []>} : vector<32x16xf32>, vector<16x8xf32>, vector<32x8xf32> -> vector<32x8xf32>
    %c0_8 = arith.constant 0 : index
    %c0_9 = arith.constant 0 : index
    %9 = vector.load %arg5[%c0_8, %c0_9] : memref<32x1xf32, #tpu.memory_space<vmem>>, vector<32x1xf32>
    %10 = vector.broadcast %9 : vector<32x1xf32> to vector<32x8xf32>
    %11 = arith.addf %8, %10 : vector<32x8xf32>
    %12 = math.tanh %11 : vector<32x8xf32>
    %c0_10 = arith.constant 0 : index
    %c0_11 = arith.constant 0 : index
    %13 = vector.load %arg6[%c0_10, %c0_11] : memref<8x32xf32, #tpu.memory_space<vmem>>, vector<8x32xf32>
    %cst_12 = arith.constant dense<0.000000e+00> : vector<8x8xf32>
    %14 = tpu.matmul %13, %12, %cst_12 {dimension_numbers = #tpu.dot_dimension_numbers<[1], [0], [0], [1], [0, 0, 1, 1], [], []>} : vector<8x32xf32>, vector<32x8xf32>, vector<8x8xf32> -> vector<8x8xf32>
    %c0_13 = arith.constant 0 : index
    %c0_14 = arith.constant 0 : index
    %15 = vector.load %arg7[%c0_13, %c0_14] : memref<8x1xf32, #tpu.memory_space<vmem>>, vector<8x1xf32>
    %16 = vector.broadcast %15 : vector<8x1xf32> to vector<8x8xf32>
    %17 = arith.addf %14, %16 : vector<8x8xf32>
    %cst_15 = arith.constant 0.000000e+00 : f32
    %18 = vector.broadcast %cst_15 : f32 to vector<8x8xf32>
    %19 = arith.maximumf %17, %18 : vector<8x8xf32>
    %20 = math.absf %17 : vector<8x8xf32>
    %cst_16 = arith.constant 0.000000e+00 : f32
    %21 = vector.broadcast %cst_16 : f32 to vector<8x8xf32>
    %22 = arith.subf %21, %20 : vector<8x8xf32>
    %23 = math.exp %22 : vector<8x8xf32>
    %cst_17 = arith.constant 1.000000e+00 : f32
    %24 = vector.broadcast %cst_17 : f32 to vector<8x8xf32>
    %25 = arith.addf %24, %23 : vector<8x8xf32>
    %26 = math.log %25 : vector<8x8xf32>
    %27 = arith.addf %19, %26 : vector<8x8xf32>
    %28 = tpu.iota {dimensions = array<i32: 0>} : vector<8x8xi32>
    %c4_i32 = arith.constant 4 : i32
    %29 = vector.broadcast %c4_i32 : i32 to vector<8x8xi32>
    %30 = arith.cmpi slt, %28, %29 : vector<8x8xi32>
    %31 = arith.select %30, %17, %27 : vector<8x8xi1>, vector<8x8xf32>
    %c0_18 = arith.constant 0 : index
    %c0_19 = arith.constant 0 : index
    %32 = vector.load %arg8[%c0_18, %c0_19] : memref<8x8xf32, #tpu.memory_space<vmem>>, vector<8x8xf32>
    tpu.vector_store %arg8[%c0_18, %c0_19], %31 {strides = array<i32>} : memref<8x8xf32, #tpu.memory_space<vmem>>, vector<8x8xf32>,
    return
  }
  func.func @transform_0(%arg0: i32) -> (i32, i32) {
    %c0_i32 = arith.constant 0 : i32
    %c0_i32_0 = arith.constant 0 : i32
    return %c0_i32, %arg0 : i32, i32
  }
  func.func @transform_1(%arg0: i32) -> (i32, i32) {
    %c0_i32 = arith.constant 0 : i32
    %c0_i32_0 = arith.constant 0 : i32
    %c0_i32_1 = arith.constant 0 : i32
    return %c0_i32, %c0_i32_0 : i32, i32
  }
  func.func @transform_2(%arg0: i32) -> (i32, i32) {
    %c0_i32 = arith.constant 0 : i32
    %c0_i32_0 = arith.constant 0 : i32
    %c0_i32_1 = arith.constant 0 : i32
    return %c0_i32, %c0_i32_0 : i32, i32
  }
  func.func @transform_3(%arg0: i32) -> (i32, i32) {
    %c0_i32 = arith.constant 0 : i32
    %c0_i32_0 = arith.constant 0 : i32
    %c0_i32_1 = arith.constant 0 : i32
    return %c0_i32, %c0_i32_0 : i32, i32
  }
  func.func @transform_4(%arg0: i32) -> (i32, i32) {
    %c0_i32 = arith.constant 0 : i32
    %c0_i32_0 = arith.constant 0 : i32
    %c0_i32_1 = arith.constant 0 : i32
    return %c0_i32, %c0_i32_0 : i32, i32
  }
  func.func @transform_5(%arg0: i32) -> (i32, i32) {
    %c0_i32 = arith.constant 0 : i32
    %c0_i32_0 = arith.constant 0 : i32
    %c0_i32_1 = arith.constant 0 : i32
    return %c0_i32, %c0_i32_0 : i32, i32
  }
  func.func @transform_6(%arg0: i32) -> (i32, i32) {
    %c0_i32 = arith.constant 0 : i32
    %c0_i32_0 = arith.constant 0 : i32
    %c0_i32_1 = arith.constant 0 : i32
    return %c0_i32, %c0_i32_0 : i32, i32
  }
  func.func @transform_7(%arg0: i32) -> (i32, i32) {
    %c0_i32 = arith.constant 0 : i32
    %c0_i32_0 = arith.constant 0 : i32
    return %c0_i32, %arg0 : i32, i32
  }
}

</mosaic_0001>

<llo_original>
// kernel: drone_policy_forward.1
$region0: #{drone_policy_forward.1}
  #allocation0 [shape = 'u32[]', space=smem, size = 0x4, offset = 0x4, fixed_abs, tag = 'smem constant byte address 0x4 - core index']
  #allocation1 [shape = 'u32[144,128]{1,0:T(1,128)}', space=vmem, size = 0x12000, scoped, tag = 'internal scratch']
  %s0 = inlined_call_operand.vmem [shape: f32[12,8], index: 0, kind: input, shape index: {}]
  %s1 = inlined_call_operand.vmem [shape: f32[16,12], index: 1, kind: input, shape index: {}]
  %s2 = inlined_call_operand.vmem [shape: f32[16,1], index: 2, kind: input, shape index: {}]
  %s3 = inlined_call_operand.vmem [shape: f32[32,16], index: 3, kind: input, shape index: {}]
  %s4 = inlined_call_operand.vmem [shape: f32[32,1], index: 4, kind: input, shape index: {}]
  %s5 = inlined_call_operand.vmem [shape: f32[8,32], index: 5, kind: input, shape index: {}]
  %s6 = inlined_call_operand.vmem [shape: f32[8,1], index: 6, kind: input, shape index: {}]
  %s7 = inlined_call_operand.vmem [shape: f32[8,8], index: 7, kind: output, shape index: {}]
  %s8 = sld [smem:[#allocation0]]
  $region38: #{drone_policy_forward.1} parent=0
    _
  %s10 = ssub.s32 1, %s8
  %s11 = scalar_select 0, %s10, %s8
  // Predicated region
  $region2: #{drone_policy_forward.1} parent=0 // pred_check
    _
  $region3: #{drone_policy_forward.1} parent=0 // pred_check_branch
    %13 = sbr.rel (0) target = $region5
  $region4: #{drone_policy_forward.1} parent=0 // pred_region
    _
  $region5: #{drone_policy_forward.1} parent=0 // pred_fallthru
    _
  // Predicated region
  $region6: #{drone_policy_forward.1} parent=0 // pred_check
    _
  $region7: #{drone_policy_forward.1} parent=0 // pred_check_branch
    %15 = sbr.rel (0) target = $region9
  $region8: #{drone_policy_forward.1} parent=0 // pred_region
    _
  $region9: #{drone_policy_forward.1} parent=0 // pred_fallthru
    _
  // Predicated region
  $region10: #{drone_policy_forward.1} parent=0 // pred_check
    _
  $region11: #{drone_policy_forward.1} parent=0 // pred_check_branch
    %17 = sbr.rel (0) target = $region13
  $region12: #{drone_policy_forward.1} parent=0 // pred_region
    _
  $region13: #{drone_policy_forward.1} parent=0 // pred_fallthru
    _
  // Predicated region
  $region14: #{drone_policy_forward.1} parent=0 // pred_check
    _
  $region15: #{drone_policy_forward.1} parent=0 // pred_check_branch
    %19 = sbr.rel (0) target = $region17
  $region16: #{drone_policy_forward.1} parent=0 // pred_region
    _
  $region17: #{drone_policy_forward.1} parent=0 // pred_fallthru
    _
  // Predicated region
  $region18: #{drone_policy_forward.1} parent=0 // pred_check
    _
  $region19: #{drone_policy_forward.1} parent=0 // pred_check_branch
    %21 = sbr.rel (0) target = $region21
  $region20: #{drone_policy_forward.1} parent=0 // pred_region
    _
  $region21: #{drone_policy_forward.1} parent=0 // pred_fallthru
    _
  // Predicated region
  $region22: #{drone_policy_forward.1} parent=0 // pred_check
    _
  $region23: #{drone_policy_forward.1} parent=0 // pred_check_branch
    %23 = sbr.rel (0) target = $region25
  $region24: #{drone_policy_forward.1} parent=0 // pred_region
    _
  $region25: #{drone_policy_forward.1} parent=0 // pred_fallthru
    _
  // Predicated region
  $region26: #{drone_policy_forward.1} parent=0 // pred_check
    _
  $region27: #{drone_policy_forward.1} parent=0 // pred_check_branch
    %25 = sbr.rel (0) target = $region29
  $region28: #{drone_policy_forward.1} parent=0 // pred_region
    _
  $region29: #{drone_policy_forward.1} parent=0 // pred_fallthru
    _
  %v26 = vld [vmem:[%s0] sm:$0xff]
  %v27 = vld [vmem:[%s0 + $0x8] sm:$0xf]
  %v28 = vld [vmem:[%s1] sm:$0xff]
  %v29 = vld [vmem:[%s1 + $0x8] sm:$0xff]
  %v30 = vld [vmem:[%s2] sm:$0xff]
  %v31 = vld [vmem:[%s2 + $0x8] sm:$0xff]
  %33 = vset.pattern.permute.xlu0 0
  %34 = vperm.xlu0 %33, %v30
  %v35 = vpop.permute.xlu0 %34
  %38 = vset.pattern.permute.xlu0 0
  %39 = vperm.xlu0 %38, %v31
  %v40 = vpop.permute.xlu0 %39
  %vm42 = vcmask 97280
  %v44 = vsel %vm42, %v28, 0
  %v47 = vsel %vm42, %v29, 0
  %vm49 = vcmask 1043456
  %v51 = vsel %vm49, %v27, 0
  %53 = vmatprep.subr.mxu0 0.0
  %54 = vmatpush1.msra.mxu0 0.0
  %55 = vmatprep.subr.mxu0 0.0
  %56 = vmatpush1.msra.mxu0 0.0
  %57 = vmatprep.subr.mxu0 0.0
  %58 = vmatpush1.msra.mxu0 0.0
  %59 = vmatprep.subr.mxu0 0.0
  %60 = vmatpush1.msra.mxu0 0.0
  %61 = vmatprep.subr.mxu0 0.0
  %62 = vmatpush1.msra.mxu0 0.0
  %63 = vmatprep.subr.mxu0 0.0
  %64 = vmatpush1.msra.mxu0 0.0
  %65 = vmatprep.subr.mxu0 0.0
  %66 = vmatpush1.msra.mxu0 0.0
  %67 = vmatprep.subr.mxu0 0.0
  %68 = vmatpush1.msra.mxu0 0.0
  %69 = vmatprep.subr.mxu0 0.0
  %70 = vmatpush1.msra.mxu0 0.0
  %71 = vmatprep.subr.mxu0 0.0
  %72 = vmatpush1.msra.mxu0 0.0
  %73 = vmatprep.subr.mxu0 0.0
  %74 = vmatpush1.msra.mxu0 0.0
  %75 = vmatprep.subr.mxu0 0.0
  %76 = vmatpush1.msra.mxu0 0.0
  %77 = vmatprep.subr.mxu0 0.0
  %78 = vmatpush1.msra.mxu0 0.0
  %79 = vmatprep.subr.mxu0 0.0
  %80 = vmatpush1.msra.mxu0 0.0
  %81 = vmatprep.subr.mxu0 0.0
  %82 = vmatpush1.msra.mxu0 %v51
  %83 = vmatprep.subr.mxu0 0.0
  %84 = vmatpush1.msra.mxu0 %v26
  %85 = vmatprep.subr.mxu0 0.0
  %86 = vmatpush2.msra.mxu0 0.0
  %87 = vmatprep.subr.mxu0 0.0
  %88 = vmatpush2.msra.mxu0 0.0
  %89 = vmatprep.subr.mxu0 0.0
  %90 = vmatpush2.msra.mxu0 0.0
  %91 = vmatprep.subr.mxu0 0.0
  %92 = vmatpush2.msra.mxu0 0.0
  %93 = vmatprep.subr.mxu0 0.0
  %94 = vmatpush2.msra.mxu0 0.0
  %95 = vmatprep.subr.mxu0 0.0
  %96 = vmatpush2.msra.mxu0 0.0
  %97 = vmatprep.subr.mxu0 0.0
  %98 = vmatpush2.msra.mxu0 0.0
  %99 = vmatprep.subr.mxu0 0.0
  %100 = vmatpush2.msra.mxu0 0.0
  %101 = vmatprep.subr.mxu0 0.0
  %102 = vmatpush2.msra.mxu0 0.0
  %103 = vmatprep.subr.mxu0 0.0
  %104 = vmatpush2.msra.mxu0 0.0
  %105 = vmatprep.subr.mxu0 0.0
  %106 = vmatpush2.msra.mxu0 0.0
  %107 = vmatprep.subr.mxu0 0.0
  %108 = vmatpush2.msra.mxu0 0.0
  %109 = vmatprep.subr.mxu0 0.0
  %110 = vmatpush2.msra.mxu0 0.0
  %111 = vmatprep.subr.mxu0 0.0
  %112 = vmatpush2.msra.mxu0 0.0
  %113 = vmatprep.subr.mxu0 0.0
  %114 = vmatpush2.msra.mxu0 0.0
  %115 = vmatprep.subr.mxu0 0.0
  %116 = vmatpush2.msra.mxu0 0.0
  %117 = vmatprep.mubr.f32.mxu0 0.0
  %118 = vmatmul.mubr.f32.gmra.mxu0 %v44
  %v119 = vpop.f32.mrf.mxu0
  %v120 = vadd.f32 %v35, %v119
  %v121 = vpop.f32.mrf.mxu0
  %122 = vmatprep.mubr.f32.mxu0 0.0
  %123 = vmatmul.mubr.f32.gmra.mxu0 %v47
  %v124 = vpop.f32.mrf.mxu0
  %v125 = vadd.f32 %v40, %v124
  %v126 = vpop.f32.mrf.mxu0
  %127 = vdwg.mxu0
  %v128 = vtanh.pop %v120
  %v129 = vtanh.pop %v125
  %v130 = vld [vmem:[%s3] sm:$0xff]
  %v131 = vld [vmem:[%s3 + $0x8] sm:$0xff]
  %v132 = vld [vmem:[%s3 + $0x10] sm:$0xff]
  %v133 = vld [vmem:[%s3 + $0x18] sm:$0xff]
  %v134 = vld [vmem:[%s4] sm:$0xff]
  %v135 = vld [vmem:[%s4 + $0x8] sm:$0xff]
  %v136 = vld [vmem:[%s4 + $0x10] sm:$0xff]
  %v137 = vld [vmem:[%s4 + $0x18] sm:$0xff]
  %139 = vset.pattern.permute.xlu0 0
  %140 = vperm.xlu0 %139, %v134
  %v141 = vpop.permute.xlu0 %140
  %144 = vset.pattern.permute.xlu0 0
  %145 = vperm.xlu0 %144, %v135
  %v146 = vpop.permute.xlu0 %145
  %149 = vset.pattern.permute.xlu0 0
  %150 = vperm.xlu0 %149, %v136
  %v151 = vpop.permute.xlu0 %150
  %154 = vset.pattern.permute.xlu0 0
  %155 = vperm.xlu0 %154, %v137
  %v156 = vpop.permute.xlu0 %155
  %vm158 = vcmask 130048
  %v160 = vsel %vm158, %v130, 0
  %v163 = vsel %vm158, %v131, 0
  %v166 = vsel %vm158, %v132, 0
  %v169 = vsel %vm158, %v133, 0
  %171 = vmatprep.subr.mxu0 0.0
  %172 = vmatpush1.msra.mxu0 0.0
  %173 = vmatprep.subr.mxu0 0.0
  %174 = vmatpush1.msra.mxu0 0.0
  %175 = vmatprep.subr.mxu0 0.0
  %176 = vmatpush1.msra.mxu0 0.0
  %177 = vmatprep.subr.mxu0 0.0
  %178 = vmatpush1.msra.mxu0 0.0
  %179 = vmatprep.subr.mxu0 0.0
  %180 = vmatpush1.msra.mxu0 0.0
  %181 = vmatprep.subr.mxu0 0.0
  %182 = vmatpush1.msra.mxu0 0.0
  %183 = vmatprep.subr.mxu0 0.0
  %184 = vmatpush1.msra.mxu0 0.0
  %185 = vmatprep.subr.mxu0 0.0
  %186 = vmatpush1.msra.mxu0 0.0
  %187 = vmatprep.subr.mxu0 0.0
  %188 = vmatpush1.msra.mxu0 0.0
  %189 = vmatprep.subr.mxu0 0.0
  %190 = vmatpush1.msra.mxu0 0.0
  %191 = vmatprep.subr.mxu0 0.0
  %192 = vmatpush1.msra.mxu0 0.0
  %193 = vmatprep.subr.mxu0 0.0
  %194 = vmatpush1.msra.mxu0 0.0
  %195 = vmatprep.subr.mxu0 0.0
  %196 = vmatpush1.msra.mxu0 0.0
  %197 = vmatprep.subr.mxu0 0.0
  %198 = vmatpush1.msra.mxu0 0.0
  %199 = vmatprep.subr.mxu0 0.0
  %200 = vmatpush1.msra.mxu0 %v129
  %201 = vmatprep.subr.mxu0 0.0
  %202 = vmatpush1.msra.mxu0 %v128
  %203 = vmatprep.subr.mxu0 0.0
  %204 = vmatpush2.msra.mxu0 0.0
  %205 = vmatprep.subr.mxu0 0.0
  %206 = vmatpush2.msra.mxu0 0.0
  %207 = vmatprep.subr.mxu0 0.0
  %208 = vmatpush2.msra.mxu0 0.0
  %209 = vmatprep.subr.mxu0 0.0
  %210 = vmatpush2.msra.mxu0 0.0
  %211 = vmatprep.subr.mxu0 0.0
  %212 = vmatpush2.msra.mxu0 0.0
  %213 = vmatprep.subr.mxu0 0.0
  %214 = vmatpush2.msra.mxu0 0.0
  %215 = vmatprep.subr.mxu0 0.0
  %216 = vmatpush2.msra.mxu0 0.0
  %217 = vmatprep.subr.mxu0 0.0
  %218 = vmatpush2.msra.mxu0 0.0
  %219 = vmatprep.subr.mxu0 0.0
  %220 = vmatpush2.msra.mxu0 0.0
  %221 = vmatprep.subr.mxu0 0.0
  %222 = vmatpush2.msra.mxu0 0.0
  %223 = vmatprep.subr.mxu0 0.0
  %224 = vmatpush2.msra.mxu0 0.0
  %225 = vmatprep.subr.mxu0 0.0
  %226 = vmatpush2.msra.mxu0 0.0
  %227 = vmatprep.subr.mxu0 0.0
  %228 = vmatpush2.msra.mxu0 0.0
  %229 = vmatprep.subr.mxu0 0.0
  %230 = vmatpush2.msra.mxu0 0.0
  %231 = vmatprep.subr.mxu0 0.0
  %232 = vmatpush2.msra.mxu0 0.0
  %233 = vmatprep.subr.mxu0 0.0
  %234 = vmatpush2.msra.mxu0 0.0
  %235 = vmatprep.mubr.f32.mxu0 0.0
  %236 = vmatmul.mubr.f32.gmra.mxu0 %v160
  %v237 = vpop.f32.mrf.mxu0
  %v238 = vadd.f32 %v141, %v237
  %v239 = vpop.f32.mrf.mxu0
  %240 = vmatprep.mubr.f32.mxu0 0.0
  %241 = vmatmul.mubr.f32.gmra.mxu0 %v163
  %v242 = vpop.f32.mrf.mxu0
  %v243 = vadd.f32 %v146, %v242
  %v244 = vpop.f32.mrf.mxu0
  %245 = vmatprep.mubr.f32.mxu0 0.0
  %246 = vmatmul.mubr.f32.gmra.mxu0 %v166
  %v247 = vpop.f32.mrf.mxu0
  %v248 = vadd.f32 %v151, %v247
  %v249 = vpop.f32.mrf.mxu0
  %250 = vmatprep.mubr.f32.mxu0 0.0
  %251 = vmatmul.mubr.f32.gmra.mxu0 %v169
  %v252 = vpop.f32.mrf.mxu0
  %v253 = vadd.f32 %v156, %v252
  %v254 = vpop.f32.mrf.mxu0
  %255 = vdwg.mxu0
  %v256 = vtanh.pop %v238
  %v257 = vtanh.pop %v243
  %v258 = vtanh.pop %v248
  %v259 = vtanh.pop %v253
  %v260 = vld [vmem:[%s5] sm:$0xff]
  %v261 = vld [vmem:[%s6] sm:$0xff]
  %263 = vset.pattern.permute.xlu0 0
  %264 = vperm.xlu0 %263, %v261
  %v265 = vpop.permute.xlu0 %264
  %vm267 = vcmask 261120
  %v269 = vsel %vm267, %v260, 0
  %271 = vmatprep.subr.mxu0 0.0
  %272 = vmatpush1.msra.mxu0 0.0
  %273 = vmatprep.subr.mxu0 0.0
  %274 = vmatpush1.msra.mxu0 0.0
  %275 = vmatprep.subr.mxu0 0.0
  %276 = vmatpush1.msra.mxu0 0.0
  %277 = vmatprep.subr.mxu0 0.0
  %278 = vmatpush1.msra.mxu0 0.0
  %279 = vmatprep.subr.mxu0 0.0
  %280 = vmatpush1.msra.mxu0 0.0
  %281 = vmatprep.subr.mxu0 0.0
  %282 = vmatpush1.msra.mxu0 0.0
  %283 = vmatprep.subr.mxu0 0.0
  %284 = vmatpush1.msra.mxu0 0.0
  %285 = vmatprep.subr.mxu0 0.0
  %286 = vmatpush1.msra.mxu0 0.0
  %287 = vmatprep.subr.mxu0 0.0
  %288 = vmatpush1.msra.mxu0 0.0
  %289 = vmatprep.subr.mxu0 0.0
  %290 = vmatpush1.msra.mxu0 0.0
  %291 = vmatprep.subr.mxu0 0.0
  %292 = vmatpush1.msra.mxu0 0.0
  %293 = vmatprep.subr.mxu0 0.0
  %294 = vmatpush1.msra.mxu0 0.0
  %295 = vmatprep.subr.mxu0 0.0
  %296 = vmatpush1.msra.mxu0 %v259
  %297 = vmatprep.subr.mxu0 0.0
  %298 = vmatpush1.msra.mxu0 %v258
  %299 = vmatprep.subr.mxu0 0.0
  %300 = vmatpush1.msra.mxu0 %v257
  %301 = vmatprep.subr.mxu0 0.0
  %302 = vmatpush1.msra.mxu0 %v256
  %303 = vmatprep.subr.mxu0 0.0
  %304 = vmatpush2.msra.mxu0 0.0
  %305 = vmatprep.subr.mxu0 0.0
  %306 = vmatpush2.msra.mxu0 0.0
  %307 = vmatprep.subr.mxu0 0.0
  %308 = vmatpush2.msra.mxu0 0.0
  %309 = vmatprep.subr.mxu0 0.0
  %310 = vmatpush2.msra.mxu0 0.0
  %311 = vmatprep.subr.mxu0 0.0
  %312 = vmatpush2.msra.mxu0 0.0
  %313 = vmatprep.subr.mxu0 0.0
  %314 = vmatpush2.msra.mxu0 0.0
  %315 = vmatprep.subr.mxu0 0.0
  %316 = vmatpush2.msra.mxu0 0.0
  %317 = vmatprep.subr.mxu0 0.0
  %318 = vmatpush2.msra.mxu0 0.0
  %319 = vmatprep.subr.mxu0 0.0
  %320 = vmatpush2.msra.mxu0 0.0
  %321 = vmatprep.subr.mxu0 0.0
  %322 = vmatpush2.msra.mxu0 0.0
  %323 = vmatprep.subr.mxu0 0.0
  %324 = vmatpush2.msra.mxu0 0.0
  %325 = vmatprep.subr.mxu0 0.0
  %326 = vmatpush2.msra.mxu0 0.0
  %327 = vmatprep.subr.mxu0 0.0
  %328 = vmatpush2.msra.mxu0 0.0
  %329 = vmatprep.subr.mxu0 0.0
  %330 = vmatpush2.msra.mxu0 0.0
  %331 = vmatprep.subr.mxu0 0.0
  %332 = vmatpush2.msra.mxu0 0.0
  %333 = vmatprep.subr.mxu0 0.0
  %334 = vmatpush2.msra.mxu0 0.0
  %335 = vmatprep.mubr.f32.mxu0 0.0
  %336 = vmatmul.mubr.f32.gmra.mxu0 %v269
  %v337 = vpop.f32.mrf.mxu0
  %v338 = vadd.f32 %v265, %v337
  %v339 = vpop.f32.mrf.mxu0
  %340 = vdwg.mxu0
  %v341 = vmax.f32 %v338, 0.0
  %v342 = vand.u32 2147483647, %v338
  %v343 = vsub.f32 0.0, %v342
  %v344 = vmul.f32 %v343, 1.442695
  %v345 = vpow.pop %v344
  %v346 = vadd.f32 %v345, 1.0
  %v347 = vlog2.pop %v346
  %v348 = vmul.f32 %v347, 0.6931472
  %v349 = vadd.f32 %v341, %v348
  %v350 = vlaneseq
  %v351 = vshrl.u32 %v350, 7
  %vm352 = vcmp.lt.s32.totalorder %v351, 4
  %v353 = vsel %vm352, %v338, %v349
  %vm354 = vcmask 64512
  %355 = vst.msk [vmem:[%s7] sm:$0xff] %vm354, %v353
  // Predicated region
  $region30: #{drone_policy_forward.1} parent=0 // pred_check
    _
  $region31: #{drone_policy_forward.1} parent=0 // pred_check_branch
    %357 = sbr.rel (0) target = $region33
  $region32: #{drone_policy_forward.1} parent=0 // pred_region
    _
  $region33: #{drone_policy_forward.1} parent=0 // pred_fallthru
    _
  // Predicated region
  $region34: #{drone_policy_forward.1} parent=0 // pred_check
    _
  $region35: #{drone_policy_forward.1} parent=0 // pred_check_branch
    %359 = sbr.rel (0) target = $region37
  $region36: #{drone_policy_forward.1} parent=0 // pred_region
    _
  $region37: #{drone_policy_forward.1} parent=0 // pred_fallthru
    _

</llo_original>
